<compile_context>
chip_gen: v5e
topology: v5e:2x2
jax: 0.10.0
libtpu: 0.0.40
codegen_flags: <defaults>
</compile_context>

<pallas_src>
import functools

import jax
import jax.numpy as jnp
from jax.experimental import pallas as pl
from jax.experimental.pallas import tpu as pltpu

BN_EPS = 1e-5
LANE = 128


def _batchnorm_train(x, gamma, beta, inv_n):
    # Single-pass batch statistics: sum(x) and sum(x*x) together (one XLU reduce walk
    # instead of two); var clamped at 0 for fp safety, eps keeps rsqrt finite.
    s1 = jnp.sum(x, axis=0, keepdims=True)
    s2 = jnp.sum(x * x, axis=0, keepdims=True)
    m = s1 * inv_n
    var = jnp.maximum(s2 * inv_n - m * m, 0.0)
    return (x - m) * jax.lax.rsqrt(var + BN_EPS) * gamma + beta


# ---------------- fused Pallas kernel ----------------

def _gnn_node_kernel(x_ref, src_ref, dst_ref, ea_ref, fcw_ref,
                     we_ref, be_ref,
                     w1_ref, b1_ref, g1_ref, bb1_ref,
                     w2_ref, b2_ref, g2_ref, bb2_ref,
                     o_ref, *, num_layer, eps, jk, residual, inv_n):
    f32 = jnp.float32
    bf16 = jnp.bfloat16
    N = x_ref.shape[0]
    E = ea_ref.shape[0]

    # fc: Linear(feat_dim, emb_dim, bias=False) -> lane-dense [N, Dp]; bf16 MXU, f32 acc
    h = jnp.dot(x_ref[...], fcw_ref[...], preferred_element_type=f32)

    # gather / scatter-add operators built once in-kernel from int32 edge indices,
    # stored in bf16 (0/1 exact), shared across all layers.
    src_oh = jnp.where(
        jax.lax.broadcasted_iota(jnp.int32, (E, N), 1) == src_ref[...],
        1.0, 0.0).astype(bf16)                                         # [E, N]
    dst_oh = jnp.where(
        jax.lax.broadcasted_iota(jnp.int32, (N, E), 0) == dst_ref[...],
        1.0, 0.0).astype(bf16)                                         # [N, E]

    ea = ea_ref[...]                                                   # [E, 4] f32 (VPU)

    rep = h if jk == 'sum' else None
    for layer in range(num_layer):                                     # static unroll
        # edge encoder: 4 VPU broadcast-FMAs instead of a K=4 MXU matmul
        we_l = we_ref[layer]                                           # [4, Dp]
        edge_emb = be_ref[layer]                                       # [1, Dp]
        for k in range(4):
            edge_emb = edge_emb + ea[:, k:k + 1] * we_l[k:k + 1, :]    # -> [E, Dp]

        # GINConv message passing: message = relu(x_j + edge_emb), aggr = add
        h_b = h.astype(bf16)
        x_j = jnp.dot(src_oh, h_b, preferred_element_type=f32)         # gather  [E, Dp]
        msg = jnp.maximum(x_j + edge_emb, 0.0)
        agg = jnp.dot(dst_oh, msg.astype(bf16),
                      preferred_element_type=f32)                      # scatter [N, Dp]
        z = (1.0 + eps) * h + agg

        # mlp: Linear(D, 2D) -> BatchNorm1d(2D) -> ReLU -> Linear(2D, D)
        h1 = (jnp.dot(z.astype(bf16), w1_ref[layer],
                      preferred_element_type=f32) + b1_ref[layer])
        h1 = jnp.maximum(
            _batchnorm_train(h1, g1_ref[layer], bb1_ref[layer], inv_n), 0.0)
        h2 = (jnp.dot(h1.astype(bf16), w2_ref[layer],
                      preferred_element_type=f32) + b2_ref[layer])

        # outer BatchNorm1d(D)
        out = _batchnorm_train(h2, g2_ref[layer], bb2_ref[layer], inv_n)
        if layer != num_layer - 1:
            out = jnp.maximum(out, 0.0)       # F.relu before dropout (p=0 -> identity)
        if residual:
            out = out + h
        h = out
        # torch 'sum' JK accumulates h_list[0 .. num_layer-1], i.e. excludes the final
        # layer's output; add the new h only while it is still h_list[<num_layer].
        if jk == 'sum' and layer < num_layer - 1:
            rep = rep + h

    o_ref[...] = h if jk == 'last' else rep


# ---------------- wrapper: pad params, stack layers, one pallas_call ----------------

def _pad_axis(a, axis, target, value=0.0):
    pad = target - a.shape[axis]
    if pad <= 0:
        return a
    widths = [(0, 0)] * a.ndim
    widths[axis] = (0, pad)
    return jnp.pad(a, widths, constant_values=value)


def _round_up(n, m):
    return ((n + m - 1) // m) * m


def gnn_node_forward(x, edge_index, edge_attr, fc_w_t, layer_params,
                     *, num_layer, JK='last', residual=False):
    if JK not in ('last', 'sum'):
        raise ValueError(f'unsupported JK: {JK}')
    N, feat_dim = x.shape
    E = edge_index.shape[1]
    emb_dim = fc_w_t.shape[1]
    d_pad = max(LANE, _round_up(emb_dim, LANE))
    h_pad = max(LANE, _round_up(2 * emb_dim, LANE))
    f_pad = max(16, _round_up(feat_dim, 16))      # bf16 sublane packing on the fc K dim

    bf16 = jnp.bfloat16
    x_p = _pad_axis(x.astype(jnp.float32), 1, f_pad).astype(bf16)
    fcw_p = _pad_axis(_pad_axis(fc_w_t.astype(jnp.float32), 1, d_pad),
                      0, f_pad).astype(bf16)

    we_l, be_l = [], []
    w1_l, b1_l, g1_l, bb1_l = [], [], [], []
    w2_l, b2_l, g2_l, bb2_l = [], [], [], []
    for (we, be, w1, b1, g1, bb1, w2, b2, g2, bb2) in layer_params:
        we_l.append(_pad_axis(we, 1, d_pad))
        be_l.append(_pad_axis(be, 1, d_pad))
        w1_l.append(_pad_axis(_pad_axis(w1, 1, h_pad), 0, d_pad))
        b1_l.append(_pad_axis(b1, 1, h_pad))
        g1_l.append(_pad_axis(g1, 1, h_pad, value=1.0))
        bb1_l.append(_pad_axis(bb1, 1, h_pad))
        w2_l.append(_pad_axis(_pad_axis(w2, 1, d_pad), 0, h_pad))
        b2_l.append(_pad_axis(b2, 1, d_pad))
        g2_l.append(_pad_axis(g2, 1, d_pad, value=1.0))
        bb2_l.append(_pad_axis(bb2, 1, d_pad))

    we_all = jnp.stack(we_l)                       # [L, 4, Dp] f32 (VPU FMAs in-kernel)
    be_all = jnp.stack(be_l)                       # [L, 1, Dp] f32
    w1 = jnp.stack(w1_l).astype(bf16)              # MXU weights in bf16
    w2 = jnp.stack(w2_l).astype(bf16)
    b1 = jnp.stack(b1_l); g1 = jnp.stack(g1_l); bb1 = jnp.stack(bb1_l)
    b2 = jnp.stack(b2_l); g2 = jnp.stack(g2_l); bb2 = jnp.stack(bb2_l)

    src_ids = edge_index[0].astype(jnp.int32).reshape(E, 1)
    dst_ids = edge_index[1].astype(jnp.int32).reshape(1, E)

    operands = (x_p, src_ids, dst_ids, edge_attr.astype(jnp.float32), fcw_p,
                we_all, be_all, w1, b1, g1, bb1, w2, b2, g2, bb2)

    # cost estimate (advisory, for XLA scheduling around the custom call)
    flops = (2 * N * f_pad * d_pad
             + num_layer * (2 * E * N * d_pad          # gather
                            + 2 * N * E * d_pad        # scatter-add
                            + 2 * N * d_pad * h_pad    # mlp linear 1
                            + 2 * N * h_pad * d_pad    # mlp linear 2
                            + 8 * E * d_pad))          # edge-encoder VPU FMAs
    operand_bytes = sum(int(op.size) * op.dtype.itemsize for op in operands)
    bytes_accessed = operand_bytes + N * d_pad * 4
    cost = pl.CostEstimate(flops=flops,
                           transcendentals=num_layer * (h_pad + d_pad),
                           bytes_accessed=bytes_accessed)

    # explicit scoped-VMEM budget (defaults are 16/32 MiB, far below physical); cap
    # below v7x's 64 MiB physical VMEM.  TODO(synk): per-generation sizing + tiling.
    intermediates = (2 * N * E * 2                     # two bf16 one-hots
                     + 6 * N * d_pad * 4               # h, rep, z, agg, h2, out (f32)
                     + 2 * N * h_pad * 4               # h1 + BN temporaries
                     + 3 * E * d_pad * 4               # edge_emb, x_j, msg (f32)
                     + (N + E) * d_pad * 2)            # bf16 casts at dot sites
    vmem_limit = int(min(60 * 1024 * 1024,
                         max(16 * 1024 * 1024, 2 * (operand_bytes + intermediates))))

    kern = functools.partial(_gnn_node_kernel, num_layer=num_layer, eps=0.0,
                             jk=JK, residual=residual, inv_n=1.0 / N)
    out_padded = pl.pallas_call(
        kern,
        out_shape=jax.ShapeDtypeStruct((N, d_pad), jnp.float32),
        in_specs=[pl.BlockSpec(memory_space=pltpu.MemorySpace.VMEM)] * len(operands),
        out_specs=pl.BlockSpec(memory_space=pltpu.MemorySpace.VMEM),
        compiler_params=pltpu.CompilerParams(vmem_limit_bytes=vmem_limit),
        cost_estimate=cost,
    )(*operands)
    return out_padded[:, :emb_dim]


# ---------------- pure-JAX f32 reference (for sanity check) ----------------

def _ref_forward(x, edge_index, edge_attr, fc_w_t, layer_params,
                 *, num_layer, JK='last', residual=False):
    h_list = [x @ fc_w_t]
    src, dst = edge_index[0], edge_index[1]
    for layer in range(num_layer):
        (we, be, w1, b1, g1, bb1, w2, b2, g2, bb2) = layer_params[layer]
        h = h_list[layer]
        edge_emb = edge_attr @ we + be
        msg = jnp.maximum(h[src] + edge_emb, 0.0)
        agg = jnp.zeros_like(h).at[dst].add(msg)
        z = h + agg
        h1 = z @ w1 + b1
        h1 = (h1 - h1.mean(0)) / jnp.sqrt(h1.var(0) + BN_EPS) * g1 + bb1
        h1 = jnp.maximum(h1, 0.0)
        h2 = h1 @ w2 + b2
        out = (h2 - h2.mean(0)) / jnp.sqrt(h2.var(0) + BN_EPS) * g2 + bb2
        if layer != num_layer - 1:
            out = jnp.maximum(out, 0.0)
        if residual:
            out = out + h
        h_list.append(out)
    if JK == 'last':
        return h_list[-1]
    rep = h_list[0]
    for layer in range(1, num_layer):
        rep = rep + h_list[layer]
    return rep


# ---------------- main ----------------

if __name__ == "__main__":
    N, E, FEAT_DIM, EMB_DIM, NUM_LAYER = 16, 32, 8, 32, 2

    key = jax.random.PRNGKey(0)
    keys = jax.random.split(key, 16)

    x = jax.random.normal(keys[0], (N, FEAT_DIM), dtype=jnp.float32)
    edge_index = jax.random.randint(keys[1], (2, E), 0, N, dtype=jnp.int32)
    edge_attr = jax.random.normal(keys[2], (E, 4), dtype=jnp.float32)

    # fc: Linear(feat_dim, emb_dim, bias=False) -> stored transposed [F, D]
    fc_w_t = 0.1 * jax.random.normal(keys[3], (FEAT_DIM, EMB_DIM), dtype=jnp.float32)

    layer_params = []
    for layer in range(NUM_LAYER):
        k = jax.random.split(keys[4 + layer], 8)
        we = 0.1 * jax.random.normal(k[0], (4, EMB_DIM), dtype=jnp.float32)        # edge_encoder W^T
        be = 0.1 * jax.random.normal(k[1], (1, EMB_DIM), dtype=jnp.float32)        # edge_encoder b
        w1 = 0.1 * jax.random.normal(k[2], (EMB_DIM, 2 * EMB_DIM), dtype=jnp.float32)
        b1 = 0.1 * jax.random.normal(k[3], (1, 2 * EMB_DIM), dtype=jnp.float32)
        g1 = jnp.ones((1, 2 * EMB_DIM), dtype=jnp.float32)                         # BatchNorm1d(2D)
        bb1 = jnp.zeros((1, 2 * EMB_DIM), dtype=jnp.float32)
        w2 = 0.1 * jax.random.normal(k[4], (2 * EMB_DIM, EMB_DIM), dtype=jnp.float32)
        b2 = 0.1 * jax.random.normal(k[5], (1, EMB_DIM), dtype=jnp.float32)
        g2 = jnp.ones((1, EMB_DIM), dtype=jnp.float32)                             # outer BatchNorm1d(D)
        bb2 = jnp.zeros((1, EMB_DIM), dtype=jnp.float32)
        layer_params.append((we, be, w1, b1, g1, bb1, w2, b2, g2, bb2))

    # bf16 dot inputs (f32 accumulation) vs the f32 reference -> loose tolerance;
    # a genuine semantic bug produces O(1) errors, far above this.
    TOL = 5e-2

    # JK='last', residual=False
    out = gnn_node_forward(x, edge_index, edge_attr, fc_w_t, layer_params,
                           num_layer=NUM_LAYER, JK='last', residual=False)
    out = jax.block_until_ready(out)
    ref = _ref_forward(x, edge_index, edge_attr, fc_w_t, layer_params,
                       num_layer=NUM_LAYER, JK='last', residual=False)
    assert out.shape == (N, EMB_DIM)
    assert jnp.allclose(out, ref, atol=TOL, rtol=TOL), "mismatch (JK=last)"

    # JK='sum', residual=True (previously unverified paths)
    out_s = gnn_node_forward(x, edge_index, edge_attr, fc_w_t, layer_params,
                             num_layer=NUM_LAYER, JK='sum', residual=True)
    out_s = jax.block_until_ready(out_s)
    ref_s = _ref_forward(x, edge_index, edge_attr, fc_w_t, layer_params,
                         num_layer=NUM_LAYER, JK='sum', residual=True)
    assert out_s.shape == (N, EMB_DIM)
    assert jnp.allclose(out_s, ref_s, atol=TOL, rtol=TOL), "mismatch (JK=sum, residual)"

    print("KERNEL_OK")
</pallas_src>

<mosaic_0001>
module attributes {stable_mosaic.version = 11 : i64} {
  func.func @_gnn_node_kernel(%arg0: memref<16x16xbf16, #tpu.memory_space<vmem>>, %arg1: memref<32x1xi32, #tpu.memory_space<vmem>>, %arg2: memref<1x32xi32, #tpu.memory_space<vmem>>, %arg3: memref<32x4xf32, #tpu.memory_space<vmem>>, %arg4: memref<16x128xbf16, #tpu.memory_space<vmem>>, %arg5: memref<2x4x128xf32, #tpu.memory_space<vmem>>, %arg6: memref<2x1x128xf32, #tpu.memory_space<vmem>>, %arg7: memref<2x128x128xbf16, #tpu.memory_space<vmem>>, %arg8: memref<2x1x128xf32, #tpu.memory_space<vmem>>, %arg9: memref<2x1x128xf32, #tpu.memory_space<vmem>>, %arg10: memref<2x1x128xf32, #tpu.memory_space<vmem>>, %arg11: memref<2x128x128xbf16, #tpu.memory_space<vmem>>, %arg12: memref<2x1x128xf32, #tpu.memory_space<vmem>>, %arg13: memref<2x1x128xf32, #tpu.memory_space<vmem>>, %arg14: memref<2x1x128xf32, #tpu.memory_space<vmem>>, %arg15: memref<16x128xf32, #tpu.memory_space<vmem>>) attributes {dimension_semantics = [], scalar_prefetch = 0 : i64, scratch_operands = 0 : i64, tpu.core_type = #tpu.core_type<tc>} {
    %c0 = arith.constant 0 : index
    %c0_0 = arith.constant 0 : index
    %0 = vector.load %arg0[%c0, %c0_0] : memref<16x16xbf16, #tpu.memory_space<vmem>>, vector<16x16xbf16>
    %c0_1 = arith.constant 0 : index
    %c0_2 = arith.constant 0 : index
    %1 = vector.load %arg4[%c0_1, %c0_2] : memref<16x128xbf16, #tpu.memory_space<vmem>>, vector<16x128xbf16>
    %cst = arith.constant dense<0.000000e+00> : vector<16x128xf32>
    %2 = tpu.matmul %0, %1, %cst {dimension_numbers = #tpu.dot_dimension_numbers<[1], [0], [0], [1], [0, 0, 1, 1], [], []>} : vector<16x16xbf16>, vector<16x128xbf16>, vector<16x128xf32> -> vector<16x128xf32>
    %3 = tpu.iota {dimensions = array<i32: 1>} : vector<32x16xi32>
    %c0_3 = arith.constant 0 : index
    %c0_4 = arith.constant 0 : index
    %4 = vector.load %arg1[%c0_3, %c0_4] : memref<32x1xi32, #tpu.memory_space<vmem>>, vector<32x1xi32>
    %5 = vector.broadcast %4 : vector<32x1xi32> to vector<32x16xi32>
    %6 = arith.cmpi eq, %3, %5 : vector<32x16xi32>
    %cst_5 = arith.constant 1.000000e+00 : f32
    %cst_6 = arith.constant 0.000000e+00 : f32
    %7 = vector.broadcast %cst_5 : f32 to vector<32x16xf32>
    %8 = vector.broadcast %cst_6 : f32 to vector<32x16xf32>
    %9 = arith.select %6, %7, %8 : vector<32x16xi1>, vector<32x16xf32>
    %10 = arith.truncf %9 : vector<32x16xf32> to vector<32x16xbf16>
    %11 = tpu.iota {dimensions = array<i32: 0>} : vector<16x32xi32>
    %c0_7 = arith.constant 0 : index
    %c0_8 = arith.constant 0 : index
    %12 = vector.load %arg2[%c0_7, %c0_8] : memref<1x32xi32, #tpu.memory_space<vmem>>, vector<1x32xi32>
    %13 = vector.broadcast %12 : vector<1x32xi32> to vector<16x32xi32>
    %14 = arith.cmpi eq, %11, %13 : vector<16x32xi32>
    %cst_9 = arith.constant 1.000000e+00 : f32
    %cst_10 = arith.constant 0.000000e+00 : f32
    %15 = vector.broadcast %cst_9 : f32 to vector<16x32xf32>
    %16 = vector.broadcast %cst_10 : f32 to vector<16x32xf32>
    %17 = arith.select %14, %15, %16 : vector<16x32xi1>, vector<16x32xf32>
    %18 = arith.truncf %17 : vector<16x32xf32> to vector<16x32xbf16>
    %c0_11 = arith.constant 0 : index
    %c0_12 = arith.constant 0 : index
    %19 = vector.load %arg3[%c0_11, %c0_12] : memref<32x4xf32, #tpu.memory_space<vmem>>, vector<32x4xf32>
    %c0_13 = arith.constant 0 : index
    %c0_14 = arith.constant 0 : index
    %c0_15 = arith.constant 0 : index
    %20 = vector.load %arg5[%c0_13, %c0_14, %c0_15] : memref<2x4x128xf32, #tpu.memory_space<vmem>>, vector<1x4x128xf32>
    %21 = vector.shape_cast %20 : vector<1x4x128xf32> to vector<4x128xf32>
    %c0_16 = arith.constant 0 : index
    %c0_17 = arith.constant 0 : index
    %c0_18 = arith.constant 0 : index
    %22 = vector.load %arg6[%c0_16, %c0_17, %c0_18] : memref<2x1x128xf32, #tpu.memory_space<vmem>>, vector<1x1x128xf32>
    %23 = vector.shape_cast %22 : vector<1x1x128xf32> to vector<1x128xf32>
    %24 = vector.extract_strided_slice %19 {offsets = [0, 0], sizes = [32, 1], strides = [1, 1]} : vector<32x4xf32> to vector<32x1xf32>
    %25 = vector.extract_strided_slice %21 {offsets = [0, 0], sizes = [1, 128], strides = [1, 1]} : vector<4x128xf32> to vector<1x128xf32>
    %26 = vector.broadcast %24 : vector<32x1xf32> to vector<32x128xf32>
    %27 = vector.broadcast %25 : vector<1x128xf32> to vector<32x128xf32>
    %28 = arith.mulf %26, %27 : vector<32x128xf32>
    %29 = vector.broadcast %23 : vector<1x128xf32> to vector<32x128xf32>
    %30 = arith.addf %29, %28 : vector<32x128xf32>
    %31 = vector.extract_strided_slice %19 {offsets = [0, 1], sizes = [32, 1], strides = [1, 1]} : vector<32x4xf32> to vector<32x1xf32>
    %32 = vector.extract_strided_slice %21 {offsets = [1, 0], sizes = [1, 128], strides = [1, 1]} : vector<4x128xf32> to vector<1x128xf32>
    %33 = vector.broadcast %31 : vector<32x1xf32> to vector<32x128xf32>
    %34 = vector.broadcast %32 : vector<1x128xf32> to vector<32x128xf32>
    %35 = arith.mulf %33, %34 : vector<32x128xf32>
    %36 = arith.addf %30, %35 : vector<32x128xf32>
    %37 = vector.extract_strided_slice %19 {offsets = [0, 2], sizes = [32, 1], strides = [1, 1]} : vector<32x4xf32> to vector<32x1xf32>
    %38 = vector.extract_strided_slice %21 {offsets = [2, 0], sizes = [1, 128], strides = [1, 1]} : vector<4x128xf32> to vector<1x128xf32>
    %39 = vector.broadcast %37 : vector<32x1xf32> to vector<32x128xf32>
    %40 = vector.broadcast %38 : vector<1x128xf32> to vector<32x128xf32>
    %41 = arith.mulf %39, %40 : vector<32x128xf32>
    %42 = arith.addf %36, %41 : vector<32x128xf32>
    %43 = vector.extract_strided_slice %19 {offsets = [0, 3], sizes = [32, 1], strides = [1, 1]} : vector<32x4xf32> to vector<32x1xf32>
    %44 = vector.extract_strided_slice %21 {offsets = [3, 0], sizes = [1, 128], strides = [1, 1]} : vector<4x128xf32> to vector<1x128xf32>
    %45 = vector.broadcast %43 : vector<32x1xf32> to vector<32x128xf32>
    %46 = vector.broadcast %44 : vector<1x128xf32> to vector<32x128xf32>
    %47 = arith.mulf %45, %46 : vector<32x128xf32>
    %48 = arith.addf %42, %47 : vector<32x128xf32>
    %49 = arith.truncf %2 : vector<16x128xf32> to vector<16x128xbf16>
    %cst_19 = arith.constant dense<0.000000e+00> : vector<32x128xf32>
    %50 = tpu.matmul %10, %49, %cst_19 {dimension_numbers = #tpu.dot_dimension_numbers<[1], [0], [0], [1], [0, 0, 1, 1], [], []>} : vector<32x16xbf16>, vector<16x128xbf16>, vector<32x128xf32> -> vector<32x128xf32>
    %51 = arith.addf %50, %48 : vector<32x128xf32>
    %cst_20 = arith.constant 0.000000e+00 : f32
    %52 = vector.broadcast %cst_20 : f32 to vector<32x128xf32>
    %53 = arith.maximumf %51, %52 : vector<32x128xf32>
    %54 = arith.truncf %53 : vector<32x128xf32> to vector<32x128xbf16>
    %cst_21 = arith.constant dense<0.000000e+00> : vector<16x128xf32>
    %55 = tpu.matmul %18, %54, %cst_21 {dimension_numbers = #tpu.dot_dimension_numbers<[1], [0], [0], [1], [0, 0, 1, 1], [], []>} : vector<16x32xbf16>, vector<32x128xbf16>, vector<16x128xf32> -> vector<16x128xf32>
    %cst_22 = arith.constant 1.000000e+00 : f32
    %56 = vector.broadcast %cst_22 : f32 to vector<16x128xf32>
    %57 = arith.mulf %56, %2 : vector<16x128xf32>
    %58 = arith.addf %57, %55 : vector<16x128xf32>
    %59 = arith.truncf %58 : vector<16x128xf32> to vector<16x128xbf16>
    %c0_23 = arith.constant 0 : index
    %c0_24 = arith.constant 0 : index
    %c0_25 = arith.constant 0 : index
    %60 = vector.load %arg7[%c0_23, %c0_24, %c0_25] : memref<2x128x128xbf16, #tpu.memory_space<vmem>>, vector<1x128x128xbf16>
    %61 = vector.shape_cast %60 : vector<1x128x128xbf16> to vector<128x128xbf16>
    %cst_26 = arith.constant dense<0.000000e+00> : vector<16x128xf32>
    %62 = tpu.matmul %59, %61, %cst_26 {dimension_numbers = #tpu.dot_dimension_numbers<[1], [0], [0], [1], [0, 0, 1, 1], [], []>} : vector<16x128xbf16>, vector<128x128xbf16>, vector<16x128xf32> -> vector<16x128xf32>
    %c0_27 = arith.constant 0 : index
    %c0_28 = arith.constant 0 : index
    %c0_29 = arith.constant 0 : index
    %63 = vector.load %arg8[%c0_27, %c0_28, %c0_29] : memref<2x1x128xf32, #tpu.memory_space<vmem>>, vector<1x1x128xf32>
    %64 = vector.shape_cast %63 : vector<1x1x128xf32> to vector<1x128xf32>
    %65 = vector.broadcast %64 : vector<1x128xf32> to vector<16x128xf32>
    %66 = arith.addf %62, %65 : vector<16x128xf32>
    %c0_30 = arith.constant 0 : index
    %c0_31 = arith.constant 0 : index
    %c0_32 = arith.constant 0 : index
    %67 = vector.load %arg9[%c0_30, %c0_31, %c0_32] : memref<2x1x128xf32, #tpu.memory_space<vmem>>, vector<1x1x128xf32>
    %68 = vector.shape_cast %67 : vector<1x1x128xf32> to vector<1x128xf32>
    %c0_33 = arith.constant 0 : index
    %c0_34 = arith.constant 0 : index
    %c0_35 = arith.constant 0 : index
    %69 = vector.load %arg10[%c0_33, %c0_34, %c0_35] : memref<2x1x128xf32, #tpu.memory_space<vmem>>, vector<1x1x128xf32>
    %70 = vector.shape_cast %69 : vector<1x1x128xf32> to vector<1x128xf32>
    %cst_36 = arith.constant dense<0.000000e+00> : vector<128xf32>
    %71 = vector.multi_reduction <add>, %66, %cst_36 [0] : vector<16x128xf32> to vector<128xf32>
    %72 = vector.shape_cast %71 : vector<128xf32> to vector<1x128xf32>
    %73 = arith.mulf %66, %66 : vector<16x128xf32>
    %cst_37 = arith.constant dense<0.000000e+00> : vector<128xf32>
    %74 = vector.multi_reduction <add>, %73, %cst_37 [0] : vector<16x128xf32> to vector<128xf32>
    %75 = vector.shape_cast %74 : vector<128xf32> to vector<1x128xf32>
    %cst_38 = arith.constant 6.250000e-02 : f32
    %76 = vector.broadcast %cst_38 : f32 to vector<1x128xf32>
    %77 = arith.mulf %72, %76 : vector<1x128xf32>
    %cst_39 = arith.constant 6.250000e-02 : f32
    %78 = vector.broadcast %cst_39 : f32 to vector<1x128xf32>
    %79 = arith.mulf %75, %78 : vector<1x128xf32>
    %80 = arith.mulf %77, %77 : vector<1x128xf32>
    %81 = arith.subf %79, %80 : vector<1x128xf32>
    %cst_40 = arith.constant 0.000000e+00 : f32
    %82 = vector.broadcast %cst_40 : f32 to vector<1x128xf32>
    %83 = arith.maximumf %81, %82 : vector<1x128xf32>
    %84 = vector.broadcast %77 : vector<1x128xf32> to vector<16x128xf32>
    %85 = arith.subf %66, %84 : vector<16x128xf32>
    %cst_41 = arith.constant 9.99999974E-6 : f32
    %86 = vector.broadcast %cst_41 : f32 to vector<1x128xf32>
    %87 = arith.addf %83, %86 : vector<1x128xf32>
    %88 = math.rsqrt %87 : vector<1x128xf32>
    %89 = vector.broadcast %88 : vector<1x128xf32> to vector<16x128xf32>
    %90 = arith.mulf %85, %89 : vector<16x128xf32>
    %91 = vector.broadcast %68 : vector<1x128xf32> to vector<16x128xf32>
    %92 = arith.mulf %90, %91 : vector<16x128xf32>
    %93 = vector.broadcast %70 : vector<1x128xf32> to vector<16x128xf32>
    %94 = arith.addf %92, %93 : vector<16x128xf32>
    %cst_42 = arith.constant 0.000000e+00 : f32
    %95 = vector.broadcast %cst_42 : f32 to vector<16x128xf32>
    %96 = arith.maximumf %94, %95 : vector<16x128xf32>
    %97 = arith.truncf %96 : vector<16x128xf32> to vector<16x128xbf16>
    %c0_43 = arith.constant 0 : index
    %c0_44 = arith.constant 0 : index
    %c0_45 = arith.constant 0 : index
    %98 = vector.load %arg11[%c0_43, %c0_44, %c0_45] : memref<2x128x128xbf16, #tpu.memory_space<vmem>>, vector<1x128x128xbf16>
    %99 = vector.shape_cast %98 : vector<1x128x128xbf16> to vector<128x128xbf16>
    %cst_46 = arith.constant dense<0.000000e+00> : vector<16x128xf32>
    %100 = tpu.matmul %97, %99, %cst_46 {dimension_numbers = #tpu.dot_dimension_numbers<[1], [0], [0], [1], [0, 0, 1, 1], [], []>} : vector<16x128xbf16>, vector<128x128xbf16>, vector<16x128xf32> -> vector<16x128xf32>
    %c0_47 = arith.constant 0 : index
    %c0_48 = arith.constant 0 : index
    %c0_49 = arith.constant 0 : index
    %101 = vector.load %arg12[%c0_47, %c0_48, %c0_49] : memref<2x1x128xf32, #tpu.memory_space<vmem>>, vector<1x1x128xf32>
    %102 = vector.shape_cast %101 : vector<1x1x128xf32> to vector<1x128xf32>
    %103 = vector.broadcast %102 : vector<1x128xf32> to vector<16x128xf32>
    %104 = arith.addf %100, %103 : vector<16x128xf32>
    %c0_50 = arith.constant 0 : index
    %c0_51 = arith.constant 0 : index
    %c0_52 = arith.constant 0 : index
    %105 = vector.load %arg13[%c0_50, %c0_51, %c0_52] : memref<2x1x128xf32, #tpu.memory_space<vmem>>, vector<1x1x128xf32>
    %106 = vector.shape_cast %105 : vector<1x1x128xf32> to vector<1x128xf32>
    %c0_53 = arith.constant 0 : index
    %c0_54 = arith.constant 0 : index
    %c0_55 = arith.constant 0 : index
    %107 = vector.load %arg14[%c0_53, %c0_54, %c0_55] : memref<2x1x128xf32, #tpu.memory_space<vmem>>, vector<1x1x128xf32>
    %108 = vector.shape_cast %107 : vector<1x1x128xf32> to vector<1x128xf32>
    %cst_56 = arith.constant dense<0.000000e+00> : vector<128xf32>
    %109 = vector.multi_reduction <add>, %104, %cst_56 [0] : vector<16x128xf32> to vector<128xf32>
    %110 = vector.shape_cast %109 : vector<128xf32> to vector<1x128xf32>
    %111 = arith.mulf %104, %104 : vector<16x128xf32>
    %cst_57 = arith.constant dense<0.000000e+00> : vector<128xf32>
    %112 = vector.multi_reduction <add>, %111, %cst_57 [0] : vector<16x128xf32> to vector<128xf32>
    %113 = vector.shape_cast %112 : vector<128xf32> to vector<1x128xf32>
    %cst_58 = arith.constant 6.250000e-02 : f32
    %114 = vector.broadcast %cst_58 : f32 to vector<1x128xf32>
    %115 = arith.mulf %110, %114 : vector<1x128xf32>
    %cst_59 = arith.constant 6.250000e-02 : f32
    %116 = vector.broadcast %cst_59 : f32 to vector<1x128xf32>
    %117 = arith.mulf %113, %116 : vector<1x128xf32>
    %118 = arith.mulf %115, %115 : vector<1x128xf32>
    %119 = arith.subf %117, %118 : vector<1x128xf32>
    %cst_60 = arith.constant 0.000000e+00 : f32
    %120 = vector.broadcast %cst_60 : f32 to vector<1x128xf32>
    %121 = arith.maximumf %119, %120 : vector<1x128xf32>
    %122 = vector.broadcast %115 : vector<1x128xf32> to vector<16x128xf32>
    %123 = arith.subf %104, %122 : vector<16x128xf32>
    %cst_61 = arith.constant 9.99999974E-6 : f32
    %124 = vector.broadcast %cst_61 : f32 to vector<1x128xf32>
    %125 = arith.addf %121, %124 : vector<1x128xf32>
    %126 = math.rsqrt %125 : vector<1x128xf32>
    %127 = vector.broadcast %126 : vector<1x128xf32> to vector<16x128xf32>
    %128 = arith.mulf %123, %127 : vector<16x128xf32>
    %129 = vector.broadcast %106 : vector<1x128xf32> to vector<16x128xf32>
    %130 = arith.mulf %128, %129 : vector<16x128xf32>
    %131 = vector.broadcast %108 : vector<1x128xf32> to vector<16x128xf32>
    %132 = arith.addf %130, %131 : vector<16x128xf32>
    %cst_62 = arith.constant 0.000000e+00 : f32
    %133 = vector.broadcast %cst_62 : f32 to vector<16x128xf32>
    %134 = arith.maximumf %132, %133 : vector<16x128xf32>
    %c1 = arith.constant 1 : index
    %c0_63 = arith.constant 0 : index
    %c0_64 = arith.constant 0 : index
    %135 = vector.load %arg5[%c1, %c0_63, %c0_64] : memref<2x4x128xf32, #tpu.memory_space<vmem>>, vector<1x4x128xf32>
    %136 = vector.shape_cast %135 : vector<1x4x128xf32> to vector<4x128xf32>
    %c1_65 = arith.constant 1 : index
    %c0_66 = arith.constant 0 : index
    %c0_67 = arith.constant 0 : index
    %137 = vector.load %arg6[%c1_65, %c0_66, %c0_67] : memref<2x1x128xf32, #tpu.memory_space<vmem>>, vector<1x1x128xf32>
    %138 = vector.shape_cast %137 : vector<1x1x128xf32> to vector<1x128xf32>
    %139 = vector.extract_strided_slice %19 {offsets = [0, 0], sizes = [32, 1], strides = [1, 1]} : vector<32x4xf32> to vector<32x1xf32>
    %140 = vector.extract_strided_slice %136 {offsets = [0, 0], sizes = [1, 128], strides = [1, 1]} : vector<4x128xf32> to vector<1x128xf32>
    %141 = vector.broadcast %139 : vector<32x1xf32> to vector<32x128xf32>
    %142 = vector.broadcast %140 : vector<1x128xf32> to vector<32x128xf32>
    %143 = arith.mulf %141, %142 : vector<32x128xf32>
    %144 = vector.broadcast %138 : vector<1x128xf32> to vector<32x128xf32>
    %145 = arith.addf %144, %143 : vector<32x128xf32>
    %146 = vector.extract_strided_slice %19 {offsets = [0, 1], sizes = [32, 1], strides = [1, 1]} : vector<32x4xf32> to vector<32x1xf32>
    %147 = vector.extract_strided_slice %136 {offsets = [1, 0], sizes = [1, 128], strides = [1, 1]} : vector<4x128xf32> to vector<1x128xf32>
    %148 = vector.broadcast %146 : vector<32x1xf32> to vector<32x128xf32>
    %149 = vector.broadcast %147 : vector<1x128xf32> to vector<32x128xf32>
    %150 = arith.mulf %148, %149 : vector<32x128xf32>
    %151 = arith.addf %145, %150 : vector<32x128xf32>
    %152 = vector.extract_strided_slice %19 {offsets = [0, 2], sizes = [32, 1], strides = [1, 1]} : vector<32x4xf32> to vector<32x1xf32>
    %153 = vector.extract_strided_slice %136 {offsets = [2, 0], sizes = [1, 128], strides = [1, 1]} : vector<4x128xf32> to vector<1x128xf32>
    %154 = vector.broadcast %152 : vector<32x1xf32> to vector<32x128xf32>
    %155 = vector.broadcast %153 : vector<1x128xf32> to vector<32x128xf32>
    %156 = arith.mulf %154, %155 : vector<32x128xf32>
    %157 = arith.addf %151, %156 : vector<32x128xf32>
    %158 = vector.extract_strided_slice %19 {offsets = [0, 3], sizes = [32, 1], strides = [1, 1]} : vector<32x4xf32> to vector<32x1xf32>
    %159 = vector.extract_strided_slice %136 {offsets = [3, 0], sizes = [1, 128], strides = [1, 1]} : vector<4x128xf32> to vector<1x128xf32>
    %160 = vector.broadcast %158 : vector<32x1xf32> to vector<32x128xf32>
    %161 = vector.broadcast %159 : vector<1x128xf32> to vector<32x128xf32>
    %162 = arith.mulf %160, %161 : vector<32x128xf32>
    %163 = arith.addf %157, %162 : vector<32x128xf32>
    %164 = arith.truncf %134 : vector<16x128xf32> to vector<16x128xbf16>
    %cst_68 = arith.constant dense<0.000000e+00> : vector<32x128xf32>
    %165 = tpu.matmul %10, %164, %cst_68 {dimension_numbers = #tpu.dot_dimension_numbers<[1], [0], [0], [1], [0, 0, 1, 1], [], []>} : vector<32x16xbf16>, vector<16x128xbf16>, vector<32x128xf32> -> vector<32x128xf32>
    %166 = arith.addf %165, %163 : vector<32x128xf32>
    %cst_69 = arith.constant 0.000000e+00 : f32
    %167 = vector.broadcast %cst_69 : f32 to vector<32x128xf32>
    %168 = arith.maximumf %166, %167 : vector<32x128xf32>
    %169 = arith.truncf %168 : vector<32x128xf32> to vector<32x128xbf16>
    %cst_70 = arith.constant dense<0.000000e+00> : vector<16x128xf32>
    %170 = tpu.matmul %18, %169, %cst_70 {dimension_numbers = #tpu.dot_dimension_numbers<[1], [0], [0], [1], [0, 0, 1, 1], [], []>} : vector<16x32xbf16>, vector<32x128xbf16>, vector<16x128xf32> -> vector<16x128xf32>
    %cst_71 = arith.constant 1.000000e+00 : f32
    %171 = vector.broadcast %cst_71 : f32 to vector<16x128xf32>
    %172 = arith.mulf %171, %134 : vector<16x128xf32>
    %173 = arith.addf %172, %170 : vector<16x128xf32>
    %174 = arith.truncf %173 : vector<16x128xf32> to vector<16x128xbf16>
    %c1_72 = arith.constant 1 : index
    %c0_73 = arith.constant 0 : index
    %c0_74 = arith.constant 0 : index
    %175 = vector.load %arg7[%c1_72, %c0_73, %c0_74] : memref<2x128x128xbf16, #tpu.memory_space<vmem>>, vector<1x128x128xbf16>
    %176 = vector.shape_cast %175 : vector<1x128x128xbf16> to vector<128x128xbf16>
    %cst_75 = arith.constant dense<0.000000e+00> : vector<16x128xf32>
    %177 = tpu.matmul %174, %176, %cst_75 {dimension_numbers = #tpu.dot_dimension_numbers<[1], [0], [0], [1], [0, 0, 1, 1], [], []>} : vector<16x128xbf16>, vector<128x128xbf16>, vector<16x128xf32> -> vector<16x128xf32>
    %c1_76 = arith.constant 1 : index
    %c0_77 = arith.constant 0 : index
    %c0_78 = arith.constant 0 : index
    %178 = vector.load %arg8[%c1_76, %c0_77, %c0_78] : memref<2x1x128xf32, #tpu.memory_space<vmem>>, vector<1x1x128xf32>
    %179 = vector.shape_cast %178 : vector<1x1x128xf32> to vector<1x128xf32>
    %180 = vector.broadcast %179 : vector<1x128xf32> to vector<16x128xf32>
    %181 = arith.addf %177, %180 : vector<16x128xf32>
    %c1_79 = arith.constant 1 : index
    %c0_80 = arith.constant 0 : index
    %c0_81 = arith.constant 0 : index
    %182 = vector.load %arg9[%c1_79, %c0_80, %c0_81] : memref<2x1x128xf32, #tpu.memory_space<vmem>>, vector<1x1x128xf32>
    %183 = vector.shape_cast %182 : vector<1x1x128xf32> to vector<1x128xf32>
    %c1_82 = arith.constant 1 : index
    %c0_83 = arith.constant 0 : index
    %c0_84 = arith.constant 0 : index
    %184 = vector.load %arg10[%c1_82, %c0_83, %c0_84] : memref<2x1x128xf32, #tpu.memory_space<vmem>>, vector<1x1x128xf32>
    %185 = vector.shape_cast %184 : vector<1x1x128xf32> to vector<1x128xf32>
    %cst_85 = arith.constant dense<0.000000e+00> : vector<128xf32>
    %186 = vector.multi_reduction <add>, %181, %cst_85 [0] : vector<16x128xf32> to vector<128xf32>
    %187 = vector.shape_cast %186 : vector<128xf32> to vector<1x128xf32>
    %188 = arith.mulf %181, %181 : vector<16x128xf32>
    %cst_86 = arith.constant dense<0.000000e+00> : vector<128xf32>
    %189 = vector.multi_reduction <add>, %188, %cst_86 [0] : vector<16x128xf32> to vector<128xf32>
    %190 = vector.shape_cast %189 : vector<128xf32> to vector<1x128xf32>
    %cst_87 = arith.constant 6.250000e-02 : f32
    %191 = vector.broadcast %cst_87 : f32 to vector<1x128xf32>
    %192 = arith.mulf %187, %191 : vector<1x128xf32>
    %cst_88 = arith.constant 6.250000e-02 : f32
    %193 = vector.broadcast %cst_88 : f32 to vector<1x128xf32>
    %194 = arith.mulf %190, %193 : vector<1x128xf32>
    %195 = arith.mulf %192, %192 : vector<1x128xf32>
    %196 = arith.subf %194, %195 : vector<1x128xf32>
    %cst_89 = arith.constant 0.000000e+00 : f32
    %197 = vector.broadcast %cst_89 : f32 to vector<1x128xf32>
    %198 = arith.maximumf %196, %197 : vector<1x128xf32>
    %199 = vector.broadcast %192 : vector<1x128xf32> to vector<16x128xf32>
    %200 = arith.subf %181, %199 : vector<16x128xf32>
    %cst_90 = arith.constant 9.99999974E-6 : f32
    %201 = vector.broadcast %cst_90 : f32 to vector<1x128xf32>
    %202 = arith.addf %198, %201 : vector<1x128xf32>
    %203 = math.rsqrt %202 : vector<1x128xf32>
    %204 = vector.broadcast %203 : vector<1x128xf32> to vector<16x128xf32>
    %205 = arith.mulf %200, %204 : vector<16x128xf32>
    %206 = vector.broadcast %183 : vector<1x128xf32> to vector<16x128xf32>
    %207 = arith.mulf %205, %206 : vector<16x128xf32>
    %208 = vector.broadcast %185 : vector<1x128xf32> to vector<16x128xf32>
    %209 = arith.addf %207, %208 : vector<16x128xf32>
    %cst_91 = arith.constant 0.000000e+00 : f32
    %210 = vector.broadcast %cst_91 : f32 to vector<16x128xf32>
    %211 = arith.maximumf %209, %210 : vector<16x128xf32>
    %212 = arith.truncf %211 : vector<16x128xf32> to vector<16x128xbf16>
    %c1_92 = arith.constant 1 : index
    %c0_93 = arith.constant 0 : index
    %c0_94 = arith.constant 0 : index
    %213 = vector.load %arg11[%c1_92, %c0_93, %c0_94] : memref<2x128x128xbf16, #tpu.memory_space<vmem>>, vector<1x128x128xbf16>
    %214 = vector.shape_cast %213 : vector<1x128x128xbf16> to vector<128x128xbf16>
    %cst_95 = arith.constant dense<0.000000e+00> : vector<16x128xf32>
    %215 = tpu.matmul %212, %214, %cst_95 {dimension_numbers = #tpu.dot_dimension_numbers<[1], [0], [0], [1], [0, 0, 1, 1], [], []>} : vector<16x128xbf16>, vector<128x128xbf16>, vector<16x128xf32> -> vector<16x128xf32>
    %c1_96 = arith.constant 1 : index
    %c0_97 = arith.constant 0 : index
    %c0_98 = arith.constant 0 : index
    %216 = vector.load %arg12[%c1_96, %c0_97, %c0_98] : memref<2x1x128xf32, #tpu.memory_space<vmem>>, vector<1x1x128xf32>
    %217 = vector.shape_cast %216 : vector<1x1x128xf32> to vector<1x128xf32>
    %218 = vector.broadcast %217 : vector<1x128xf32> to vector<16x128xf32>
    %219 = arith.addf %215, %218 : vector<16x128xf32>
    %c1_99 = arith.constant 1 : index
    %c0_100 = arith.constant 0 : index
    %c0_101 = arith.constant 0 : index
    %220 = vector.load %arg13[%c1_99, %c0_100, %c0_101] : memref<2x1x128xf32, #tpu.memory_space<vmem>>, vector<1x1x128xf32>
    %221 = vector.shape_cast %220 : vector<1x1x128xf32> to vector<1x128xf32>
    %c1_102 = arith.constant 1 : index
    %c0_103 = arith.constant 0 : index
    %c0_104 = arith.constant 0 : index
    %222 = vector.load %arg14[%c1_102, %c0_103, %c0_104] : memref<2x1x128xf32, #tpu.memory_space<vmem>>, vector<1x1x128xf32>
    %223 = vector.shape_cast %222 : vector<1x1x128xf32> to vector<1x128xf32>
    %cst_105 = arith.constant dense<0.000000e+00> : vector<128xf32>
    %224 = vector.multi_reduction <add>, %219, %cst_105 [0] : vector<16x128xf32> to vector<128xf32>
    %225 = vector.shape_cast %224 : vector<128xf32> to vector<1x128xf32>
    %226 = arith.mulf %219, %219 : vector<16x128xf32>
    %cst_106 = arith.constant dense<0.000000e+00> : vector<128xf32>
    %227 = vector.multi_reduction <add>, %226, %cst_106 [0] : vector<16x128xf32> to vector<128xf32>
    %228 = vector.shape_cast %227 : vector<128xf32> to vector<1x128xf32>
    %cst_107 = arith.constant 6.250000e-02 : f32
    %229 = vector.broadcast %cst_107 : f32 to vector<1x128xf32>
    %230 = arith.mulf %225, %229 : vector<1x128xf32>
    %cst_108 = arith.constant 6.250000e-02 : f32
    %231 = vector.broadcast %cst_108 : f32 to vector<1x128xf32>
    %232 = arith.mulf %228, %231 : vector<1x128xf32>
    %233 = arith.mulf %230, %230 : vector<1x128xf32>
    %234 = arith.subf %232, %233 : vector<1x128xf32>
    %cst_109 = arith.constant 0.000000e+00 : f32
    %235 = vector.broadcast %cst_109 : f32 to vector<1x128xf32>
    %236 = arith.maximumf %234, %235 : vector<1x128xf32>
    %237 = vector.broadcast %230 : vector<1x128xf32> to vector<16x128xf32>
    %238 = arith.subf %219, %237 : vector<16x128xf32>
    %cst_110 = arith.constant 9.99999974E-6 : f32
    %239 = vector.broadcast %cst_110 : f32 to vector<1x128xf32>
    %240 = arith.addf %236, %239 : vector<1x128xf32>
    %241 = math.rsqrt %240 : vector<1x128xf32>
    %242 = vector.broadcast %241 : vector<1x128xf32> to vector<16x128xf32>
    %243 = arith.mulf %238, %242 : vector<16x128xf32>
    %244 = vector.broadcast %221 : vector<1x128xf32> to vector<16x128xf32>
    %245 = arith.mulf %243, %244 : vector<16x128xf32>
    %246 = vector.broadcast %223 : vector<1x128xf32> to vector<16x128xf32>
    %247 = arith.addf %245, %246 : vector<16x128xf32>
    %c0_111 = arith.constant 0 : index
    %c0_112 = arith.constant 0 : index
    %248 = vector.load %arg15[%c0_111, %c0_112] : memref<16x128xf32, #tpu.memory_space<vmem>>, vector<16x128xf32>
    tpu.vector_store %arg15[%c0_111, %c0_112], %247 {strides = array<i32>} : memref<16x128xf32, #tpu.memory_space<vmem>>, vector<16x128xf32>,
    return
  }
}

</mosaic_0001>

<llo_original>
// kernel: tpu_custom_call.1
$region0: #{tpu_custom_call.1}
  #allocation0 [shape = 'u32[]', space=smem, size = 0x4, offset = 0x4, fixed_abs, tag = 'smem constant byte address 0x4 - core index']
  #allocation1 [shape = 'u32[72,128]{1,0:T(1,128)}', space=vmem, size = 0x9000, scoped, tag = 'internal scratch']
  %s0 = inlined_call_operand.vmem [shape: bf16[16,16], index: 0, kind: input, shape index: {}]
  %s1 = inlined_call_operand.vmem [shape: s32[32,1], index: 1, kind: input, shape index: {}]
  %s2 = inlined_call_operand.vmem [shape: s32[1,32], index: 2, kind: input, shape index: {}]
  %s3 = inlined_call_operand.vmem [shape: f32[32,4], index: 3, kind: input, shape index: {}]
  %s4 = inlined_call_operand.vmem [shape: bf16[16,128], index: 4, kind: input, shape index: {}]
  %s5 = inlined_call_operand.vmem [shape: f32[2,4,128], index: 5, kind: input, shape index: {}]
  %s6 = inlined_call_operand.vmem [shape: f32[2,1,128], index: 6, kind: input, shape index: {}]
  %s7 = inlined_call_operand.hbm [shape: bf16[2,128,128], index: 7, kind: input, shape index: {}]
  %s8 = inlined_call_operand.vmem [shape: f32[2,1,128], index: 8, kind: input, shape index: {}]
  %s9 = inlined_call_operand.vmem [shape: f32[2,1,128], index: 9, kind: input, shape index: {}]
  %s10 = inlined_call_operand.vmem [shape: f32[2,1,128], index: 10, kind: input, shape index: {}]
  %s11 = inlined_call_operand.hbm [shape: bf16[2,128,128], index: 11, kind: input, shape index: {}]
  %s12 = inlined_call_operand.vmem [shape: f32[2,1,128], index: 12, kind: input, shape index: {}]
  %s13 = inlined_call_operand.vmem [shape: f32[2,1,128], index: 13, kind: input, shape index: {}]
  %s14 = inlined_call_operand.vmem [shape: f32[2,1,128], index: 14, kind: input, shape index: {}]
  %s15 = inlined_call_operand.hbm [shape: f32[16,128], index: 15, kind: output, shape index: {}]
  %s16 = sld [smem:[#allocation0]]
  $region78: #{tpu_custom_call.1} parent=0
    _
  %s18 = ssub.s32 1, %s16
  %s19 = scalar_select 0, %s18, %s16
  $region1: #{tpu_custom_call.1} parent=0
    #allocation2 [shape = 'u8[65536]{0}', space=vmem, size = 0x10000, scoped, tag = 'input window, operand 7, single buffered']
    #allocation3 [shape = 's32[1]{0}', space=sflag, size = 0x4, scoped, tag = 'scoped memory for tpu_custom_call.1']
    #allocation4 [shape = 's32[1]{0}', space=sflag, size = 0x4, scoped, tag = 'scoped memory for tpu_custom_call.1']
    #allocation5 [shape = 'u8[65536]{0}', space=vmem, size = 0x10000, scoped, tag = 'input window, operand 11, single buffered']
    #allocation6 [shape = 's32[1]{0}', space=sflag, size = 0x4, scoped, tag = 'scoped memory for tpu_custom_call.1']
    #allocation7 [shape = 'u8[8192]{0}', space=vmem, size = 0x2000, scoped, tag = 'output window, operand 0, single buffered']
    %20 = vsyncpa [#allocation3], 0
    %21 = vsyncpa [#allocation6], 0
    %22 = vsyncpa [#allocation4], 0
    // Predicated region
    $region2: #{tpu_custom_call.1} parent=1 // pred_check
      _
    $region3: #{tpu_custom_call.1} parent=1 // pred_check_branch
      %24 = sbr.rel (0) target = $region5
    $region4: #{tpu_custom_call.1} parent=1 // pred_region
      _
    $region5: #{tpu_custom_call.1} parent=1 // pred_fallthru
      _
    // Predicated region
    $region6: #{tpu_custom_call.1} parent=1 // pred_check
      _
    $region7: #{tpu_custom_call.1} parent=1 // pred_check_branch
      %26 = sbr.rel (0) target = $region9
    $region8: #{tpu_custom_call.1} parent=1 // pred_region
      _
    $region9: #{tpu_custom_call.1} parent=1 // pred_fallthru
      _
    // Predicated region
    $region10: #{tpu_custom_call.1} parent=1 // pred_check
      _
    $region11: #{tpu_custom_call.1} parent=1 // pred_check_branch
      %28 = sbr.rel (0) target = $region13
    $region12: #{tpu_custom_call.1} parent=1 // pred_region
      _
    $region13: #{tpu_custom_call.1} parent=1 // pred_fallthru
      _
    // Predicated region
    $region14: #{tpu_custom_call.1} parent=1 // pred_check
      _
    $region15: #{tpu_custom_call.1} parent=1 // pred_check_branch
      %30 = sbr.rel (0) target = $region17
    $region16: #{tpu_custom_call.1} parent=1 // pred_region
      _
    $region17: #{tpu_custom_call.1} parent=1 // pred_fallthru
      _
    // Predicated region
    $region18: #{tpu_custom_call.1} parent=1 // pred_check
      _
    $region19: #{tpu_custom_call.1} parent=1 // pred_check_branch
      %32 = sbr.rel (0) target = $region21
    $region20: #{tpu_custom_call.1} parent=1 // pred_region
      _
    $region21: #{tpu_custom_call.1} parent=1 // pred_fallthru
      _
    // Predicated region
    $region22: #{tpu_custom_call.1} parent=1 // pred_check
      _
    $region23: #{tpu_custom_call.1} parent=1 // pred_check_branch
      %34 = sbr.rel (0) target = $region25
    $region24: #{tpu_custom_call.1} parent=1 // pred_region
      _
    $region25: #{tpu_custom_call.1} parent=1 // pred_fallthru
      _
    // Predicated region
    $region26: #{tpu_custom_call.1} parent=1 // pred_check
      _
    $region27: #{tpu_custom_call.1} parent=1 // pred_check_branch
      %36 = sbr.rel (0) target = $region29
    $region28: #{tpu_custom_call.1} parent=1 // pred_region
      _
    $region29: #{tpu_custom_call.1} parent=1 // pred_fallthru
      _
    // Predicated region
    $region30: #{tpu_custom_call.1} parent=1 // pred_check
      _
    $region31: #{tpu_custom_call.1} parent=1 // pred_check_branch
      %38 = sbr.rel (0) target = $region33
    $region32: #{tpu_custom_call.1} parent=1 // pred_region
      %40 = vsyncadd [#allocation3], 0
      %s41 = sshll.u32 %s7, 4
      %s42 = int_to_ptr.hbm [resolvable:$true] %s41
      %s43 = sshll.u32 [#allocation2], 4
      %s44 = int_to_ptr.vmem [resolvable:$true] %s43
      %49 = dma.hbm_to_vmem [thread:$0]  %s42, 2048, %s44, [#allocation3], 64, 64, 4
    $region33: #{tpu_custom_call.1} parent=1 // pred_fallthru
      _
    // Predicated region
    $region34: #{tpu_custom_call.1} parent=1 // pred_check
      _
    $region35: #{tpu_custom_call.1} parent=1 // pred_check_branch
      %51 = sbr.rel (0) target = $region37
    $region36: #{tpu_custom_call.1} parent=1 // pred_region
      _
    $region37: #{tpu_custom_call.1} parent=1 // pred_fallthru
      _
    // Predicated region
    $region38: #{tpu_custom_call.1} parent=1 // pred_check
      _
    $region39: #{tpu_custom_call.1} parent=1 // pred_check_branch
      %53 = sbr.rel (0) target = $region41
    $region40: #{tpu_custom_call.1} parent=1 // pred_region
      _
    $region41: #{tpu_custom_call.1} parent=1 // pred_fallthru
      _
    // Predicated region
    $region42: #{tpu_custom_call.1} parent=1 // pred_check
      _
    $region43: #{tpu_custom_call.1} parent=1 // pred_check_branch
      %55 = sbr.rel (0) target = $region45
    $region44: #{tpu_custom_call.1} parent=1 // pred_region
      _
    $region45: #{tpu_custom_call.1} parent=1 // pred_fallthru
      _
    // Predicated region
    $region46: #{tpu_custom_call.1} parent=1 // pred_check
      _
    $region47: #{tpu_custom_call.1} parent=1 // pred_check_branch
      %57 = sbr.rel (0) target = $region49
    $region48: #{tpu_custom_call.1} parent=1 // pred_region
      %59 = vsyncadd [#allocation6], 0
      %s60 = sshll.u32 %s11, 4
      %s61 = int_to_ptr.hbm [resolvable:$true] %s60
      %s62 = sshll.u32 [#allocation5], 4
      %s63 = int_to_ptr.vmem [resolvable:$true] %s62
      %68 = dma.hbm_to_vmem [thread:$0]  %s61, 2048, %s63, [#allocation6], 64, 64, 4
    $region49: #{tpu_custom_call.1} parent=1 // pred_fallthru
      _
    // Predicated region
    $region50: #{tpu_custom_call.1} parent=1 // pred_check
      _
    $region51: #{tpu_custom_call.1} parent=1 // pred_check_branch
      %70 = sbr.rel (0) target = $region53
    $region52: #{tpu_custom_call.1} parent=1 // pred_region
      _
    $region53: #{tpu_custom_call.1} parent=1 // pred_fallthru
      _
    // Predicated region
    $region54: #{tpu_custom_call.1} parent=1 // pred_check
      _
    $region55: #{tpu_custom_call.1} parent=1 // pred_check_branch
      %72 = sbr.rel (0) target = $region57
    $region56: #{tpu_custom_call.1} parent=1 // pred_region
      _
    $region57: #{tpu_custom_call.1} parent=1 // pred_fallthru
      _
    // Predicated region
    $region58: #{tpu_custom_call.1} parent=1 // pred_check
      _
    $region59: #{tpu_custom_call.1} parent=1 // pred_check_branch
      %74 = sbr.rel (0) target = $region61
    $region60: #{tpu_custom_call.1} parent=1 // pred_region
      _
    $region61: #{tpu_custom_call.1} parent=1 // pred_fallthru
      _
    // Predicated region
    $region62: #{tpu_custom_call.1} parent=1 // pred_check
      _
    $region63: #{tpu_custom_call.1} parent=1 // pred_check_branch
      %76 = sbr.rel (0) target = $region65
    $region64: #{tpu_custom_call.1} parent=1 // pred_region
      %78 = dma.done [#allocation3], 2048
    $region65: #{tpu_custom_call.1} parent=1 // pred_fallthru
      _
    // Predicated region
    $region66: #{tpu_custom_call.1} parent=1 // pred_check
      _
    $region67: #{tpu_custom_call.1} parent=1 // pred_check_branch
      %80 = sbr.rel (0) target = $region69
    $region68: #{tpu_custom_call.1} parent=1 // pred_region
      %82 = dma.done [#allocation6], 2048
    $region69: #{tpu_custom_call.1} parent=1 // pred_fallthru
      _
    %v84 = vld [vmem:[%s0] sm:$0xf]
    %v85 = vld [vmem:[%s0 + $0x4] sm:$0xf]
    %v86 = vld [vmem:[%s4] sm:$0xf]
    %v87 = vld [vmem:[%s4 + $0x4] sm:$0xf]
    %v90 = vunpack.c.l.b16 %v84
    %v91 = vunpack.c.l.b16 %v85
    %v92 = vpack.c.b16 %v91, %v90
    %v95 = vunpack.c.l.b16 %v86
    %v96 = vunpack.c.l.b16 %v87
    %v97 = vpack.c.b16 %v96, %v95
    %vm99 = vcmask 130048
    %v101 = vsel %vm99, %v92, 0
    %103 = vmatpush.bf16.msra.mxu0 0
    %104 = vmatpush.bf16.msra.mxu0 0
    %105 = vmatpush.bf16.msra.mxu0 0
    %106 = vmatpush.bf16.msra.mxu0 0
    %107 = vmatpush.bf16.msra.mxu0 0
    %108 = vmatpush.bf16.msra.mxu0 0
    %109 = vmatpush.bf16.msra.mxu0 0
    %110 = vmatpush.bf16.msra.mxu0 %v97
    %111 = vmatmul.bf16.gmra.mxu0 %v101
    %v112 = vpop.f32.mrf.mxu0
    %v113 = vadd.f32 0.0, %v112
    %v114 = vpop.f32.mrf.mxu0
    %v115 = vadd.f32 0.0, %v114
    %116 = vdwg.mxu0
    %v117 = vlaneseq
    %v118 = vand.u32 %v117, 127
    %v119 = vld [vmem:[%s1] sm:$0xff]
    %v120 = vld [vmem:[%s1 + $0x8] sm:$0xff]
    %v121 = vld [vmem:[%s1 + $0x10] sm:$0xff]
    %v122 = vld [vmem:[%s1 + $0x18] sm:$0xff]
    %123 = vset.pattern.permute.xlu0 0
    %124 = vperm.xlu0 %123, %v119
    %v125 = vpop.permute.xlu0 %124
    %126 = vset.pattern.permute.xlu0 0
    %127 = vperm.xlu0 %126, %v120
    %v128 = vpop.permute.xlu0 %127
    %129 = vset.pattern.permute.xlu0 0
    %130 = vperm.xlu0 %129, %v121
    %v131 = vpop.permute.xlu0 %130
    %132 = vset.pattern.permute.xlu0 0
    %133 = vperm.xlu0 %132, %v122
    %v134 = vpop.permute.xlu0 %133
    %vm135 = vcmp.eq.s32.totalorder %v118, %v125
    %vm136 = vcmp.eq.s32.totalorder %v118, %v128
    %vm137 = vcmp.eq.s32.totalorder %v118, %v131
    %vm138 = vcmp.eq.s32.totalorder %v118, %v134
    %v139 = vsel %vm135, 1.0, 0.0
    %v140 = vsel %vm136, 1.0, 0.0
    %v141 = vsel %vm137, 1.0, 0.0
    %v142 = vsel %vm138, 1.0, 0.0
    %v143 = vpack.c.bf16 %v140, %v139
    %v144 = vpack.c.bf16 %v142, %v141
    %v145 = vlaneseq
    %v146 = vshrl.u32 %v145, 7
    %v147 = vadd.s32 %v146, 8
    %v148 = vld [vmem:[%s2] sm:$0x1]
    %v149 = vperm.slane %v148, 0
    %vm150 = vcmp.eq.s32.totalorder %v146, %v149
    %vm151 = vcmp.eq.s32.totalorder %v147, %v149
    %v152 = vsel %vm150, 1.0, 0.0
    %v153 = vsel %vm151, 1.0, 0.0
    %v154 = vpack.c.bf16 %v153, %v152
    %v155 = vld [vmem:[%s3] sm:$0xff]
    %v156 = vld [vmem:[%s3 + $0x8] sm:$0xff]
    %v157 = vld [vmem:[%s3 + $0x10] sm:$0xff]
    %v158 = vld [vmem:[%s3 + $0x18] sm:$0xff]
    %v159 = vld [vmem:[%s5] sm:$0xf]
    %v160 = vld [vmem:[%s6] sm:$0x1]
    %162 = vset.pattern.permute.xlu0 0
    %163 = vperm.xlu0 %162, %v155
    %v164 = vpop.permute.xlu0 %163
    %167 = vset.pattern.permute.xlu0 0
    %168 = vperm.xlu0 %167, %v156
    %v169 = vpop.permute.xlu0 %168
    %172 = vset.pattern.permute.xlu0 0
    %173 = vperm.xlu0 %172, %v157
    %v174 = vpop.permute.xlu0 %173
    %177 = vset.pattern.permute.xlu0 0
    %178 = vperm.xlu0 %177, %v158
    %v179 = vpop.permute.xlu0 %178
    %v181 = vperm.slane %v159, 0
    %v182 = vmul.f32 %v164, %v181
    %v183 = vmul.f32 %v169, %v181
    %v184 = vmul.f32 %v174, %v181
    %v185 = vmul.f32 %v179, %v181
    %v187 = vperm.slane %v160, 0
    %v189 = vadd.f32 %v187, %v182
    %v190 = vadd.f32 %v187, %v183
    %v191 = vadd.f32 %v187, %v184
    %v192 = vadd.f32 %v187, %v185
    %193 = vset.pattern.permute.xlu0 1
    %194 = vperm.xlu0 %193, %v155
    %v195 = vpop.permute.xlu0 %194
    %197 = vset.pattern.permute.xlu0 1
    %198 = vperm.xlu0 %197, %v156
    %v199 = vpop.permute.xlu0 %198
    %201 = vset.pattern.permute.xlu0 1
    %202 = vperm.xlu0 %201, %v157
    %v203 = vpop.permute.xlu0 %202
    %205 = vset.pattern.permute.xlu0 1
    %206 = vperm.xlu0 %205, %v158
    %v207 = vpop.permute.xlu0 %206
    %v209 = vperm.slane %v159, 1
    %v210 = vmul.f32 %v195, %v209
    %v211 = vmul.f32 %v199, %v209
    %v212 = vmul.f32 %v203, %v209
    %v213 = vmul.f32 %v207, %v209
    %v214 = vadd.f32 %v189, %v210
    %v215 = vadd.f32 %v190, %v211
    %v216 = vadd.f32 %v191, %v212
    %v217 = vadd.f32 %v192, %v213
    %218 = vset.pattern.permute.xlu0 2
    %219 = vperm.xlu0 %218, %v155
    %v220 = vpop.permute.xlu0 %219
    %222 = vset.pattern.permute.xlu0 2
    %223 = vperm.xlu0 %222, %v156
    %v224 = vpop.permute.xlu0 %223
    %226 = vset.pattern.permute.xlu0 2
    %227 = vperm.xlu0 %226, %v157
    %v228 = vpop.permute.xlu0 %227
    %230 = vset.pattern.permute.xlu0 2
    %231 = vperm.xlu0 %230, %v158
    %v232 = vpop.permute.xlu0 %231
    %v234 = vperm.slane %v159, 2
    %v235 = vmul.f32 %v220, %v234
    %v236 = vmul.f32 %v224, %v234
    %v237 = vmul.f32 %v228, %v234
    %v238 = vmul.f32 %v232, %v234
    %v239 = vadd.f32 %v214, %v235
    %v240 = vadd.f32 %v215, %v236
    %v241 = vadd.f32 %v216, %v237
    %v242 = vadd.f32 %v217, %v238
    %243 = vset.pattern.permute.xlu0 3
    %244 = vperm.xlu0 %243, %v155
    %v245 = vpop.permute.xlu0 %244
    %247 = vset.pattern.permute.xlu0 3
    %248 = vperm.xlu0 %247, %v156
    %v249 = vpop.permute.xlu0 %248
    %251 = vset.pattern.permute.xlu0 3
    %252 = vperm.xlu0 %251, %v157
    %v253 = vpop.permute.xlu0 %252
    %255 = vset.pattern.permute.xlu0 3
    %256 = vperm.xlu0 %255, %v158
    %v257 = vpop.permute.xlu0 %256
    %v259 = vperm.slane %v159, 3
    %v260 = vmul.f32 %v245, %v259
    %v261 = vmul.f32 %v249, %v259
    %v262 = vmul.f32 %v253, %v259
    %v263 = vmul.f32 %v257, %v259
    %v264 = vadd.f32 %v239, %v260
    %v265 = vadd.f32 %v240, %v261
    %v266 = vadd.f32 %v241, %v262
    %v267 = vadd.f32 %v242, %v263
    %v268 = vpack.c.bf16 %v115, %v113
    %v270 = vsel %vm99, %v143, 0
    %v273 = vsel %vm99, %v144, 0
    %275 = vmatpush.bf16.msra.mxu0 0
    %276 = vmatpush.bf16.msra.mxu0 0
    %277 = vmatpush.bf16.msra.mxu0 0
    %278 = vmatpush.bf16.msra.mxu0 0
    %279 = vmatpush.bf16.msra.mxu0 0
    %280 = vmatpush.bf16.msra.mxu0 0
    %281 = vmatpush.bf16.msra.mxu0 0
    %282 = vmatpush.bf16.msra.mxu0 %v268
    %283 = vmatmul.bf16.gmra.mxu0 %v270
    %v284 = vpop.f32.mrf.mxu0
    %v285 = vadd.f32 %v264, %v284
    %v286 = vpop.f32.mrf.mxu0
    %v287 = vadd.f32 %v265, %v286
    %288 = vmatmul.bf16.gmra.mxu0 %v273
    %v289 = vpop.f32.mrf.mxu0
    %v290 = vadd.f32 %v266, %v289
    %v291 = vpop.f32.mrf.mxu0
    %v292 = vadd.f32 %v267, %v291
    %293 = vdwg.mxu0
    %v294 = vmax.f32 %v285, 0.0
    %v295 = vmax.f32 %v287, 0.0
    %v296 = vmax.f32 %v290, 0.0
    %v297 = vmax.f32 %v292, 0.0
    %v298 = vpack.c.bf16 %v295, %v294
    %v299 = vpack.c.bf16 %v297, %v296
    %vm300 = vcmask 261120
    %v302 = vsel %vm300, %v154, 0
    %304 = vmatpush.bf16.msra.mxu0 0
    %305 = vmatpush.bf16.msra.mxu0 0
    %306 = vmatpush.bf16.msra.mxu0 0
    %307 = vmatpush.bf16.msra.mxu0 0
    %308 = vmatpush.bf16.msra.mxu0 0
    %309 = vmatpush.bf16.msra.mxu0 0
    %310 = vmatpush.bf16.msra.mxu0 %v299
    %311 = vmatpush.bf16.msra.mxu0 %v298
    %312 = vmatmul.bf16.gmra.mxu0 %v302
    %v313 = vpop.f32.mrf.mxu0
    %v314 = vadd.f32 0.0, %v313
    %v315 = vpop.f32.mrf.mxu0
    %v316 = vadd.f32 0.0, %v315
    %317 = vdwg.mxu0
    %v318 = vadd.f32 %v113, %v314
    %v319 = vadd.f32 %v115, %v316
    %v320 = vpack.c.bf16 %v319, %v318
    %v321 = vld [vmem:[#allocation2] sm:$0xf]
    %v322 = vld [vmem:[#allocation2 + $0x4] sm:$0xf]
    %v323 = vld [vmem:[#allocation2 + $0x8] sm:$0xf]
    %v324 = vld [vmem:[#allocation2 + $0xc] sm:$0xf]
    %v325 = vld [vmem:[#allocation2 + $0x10] sm:$0xf]
    %v326 = vld [vmem:[#allocation2 + $0x14] sm:$0xf]
    %v327 = vld [vmem:[#allocation2 + $0x18] sm:$0xf]
    %v328 = vld [vmem:[#allocation2 + $0x1c] sm:$0xf]
    %v329 = vld [vmem:[#allocation2 + $0x20] sm:$0xf]
    %v330 = vld [vmem:[#allocation2 + $0x24] sm:$0xf]
    %v331 = vld [vmem:[#allocation2 + $0x28] sm:$0xf]
    %v332 = vld [vmem:[#allocation2 + $0x2c] sm:$0xf]
    %v333 = vld [vmem:[#allocation2 + $0x30] sm:$0xf]
    %v334 = vld [vmem:[#allocation2 + $0x34] sm:$0xf]
    %v335 = vld [vmem:[#allocation2 + $0x38] sm:$0xf]
    %v336 = vld [vmem:[#allocation2 + $0x3c] sm:$0xf]
    %v337 = vld [vmem:[%s8] sm:$0x1]
    %v339 = vperm.slane %v337, 0
    %v357 = vunpack.c.l.b16 %v321
    %v358 = vunpack.c.l.b16 %v322
    %v359 = vunpack.c.l.b16 %v323
    %v360 = vunpack.c.l.b16 %v324
    %v361 = vunpack.c.l.b16 %v325
    %v362 = vunpack.c.l.b16 %v326
    %v363 = vunpack.c.l.b16 %v327
    %v364 = vunpack.c.l.b16 %v328
    %v365 = vunpack.c.l.b16 %v329
    %v366 = vunpack.c.l.b16 %v330
    %v367 = vunpack.c.l.b16 %v331
    %v368 = vunpack.c.l.b16 %v332
    %v369 = vunpack.c.l.b16 %v333
    %v370 = vunpack.c.l.b16 %v334
    %v371 = vunpack.c.l.b16 %v335
    %v372 = vunpack.c.l.b16 %v336
    %v373 = vpack.c.b16 %v358, %v357
    %v374 = vpack.c.b16 %v360, %v359
    %v375 = vpack.c.b16 %v362, %v361
    %v376 = vpack.c.b16 %v364, %v363
    %v377 = vpack.c.b16 %v366, %v365
    %v378 = vpack.c.b16 %v368, %v367
    %v379 = vpack.c.b16 %v370, %v369
    %v380 = vpack.c.b16 %v372, %v371
    %389 = vmatpush.bf16.msra.mxu0 %v380
    %390 = vmatpush.bf16.msra.mxu0 %v379
    %391 = vmatpush.bf16.msra.mxu0 %v378
    %392 = vmatpush.bf16.msra.mxu0 %v377
    %393 = vmatpush.bf16.msra.mxu0 %v376
    %394 = vmatpush.bf16.msra.mxu0 %v375
    %395 = vmatpush.bf16.msra.mxu0 %v374
    %396 = vmatpush.bf16.msra.mxu0 %v373
    %397 = vmatmul.bf16.gmra.mxu0 %v320
    %v398 = vpop.f32.mrf.mxu0
    %v399 = vadd.f32 %v339, %v398
    %v400 = vpop.f32.mrf.mxu0
    %v401 = vadd.f32 %v339, %v400
    %402 = vdwg.mxu0
    %v403 = vld [vmem:[%s9] sm:$0x1]
    %v404 = vld [vmem:[%s10] sm:$0x1]
    %v405 = vadd.f32 %v399, %v401
    %v406 = vrot.slane %v405, 4
    %v407 = vadd.f32 %v405, %v406
    %v408 = vrot.slane %v407, 2
    %v409 = vadd.f32 %v407, %v408
    %v410 = vrot.slane %v409, 1
    %v411 = vadd.f32 %v409, %v410
    %v412 = vmul.f32 %v399, %v399
    %v413 = vmul.f32 %v401, %v401
    %v414 = vadd.f32 %v412, %v413
    %v415 = vrot.slane %v414, 4
    %v416 = vadd.f32 %v414, %v415
    %v417 = vrot.slane %v416, 2
    %v418 = vadd.f32 %v416, %v417
    %v419 = vrot.slane %v418, 1
    %v420 = vadd.f32 %v418, %v419
    %v421 = vmul.f32 %v411, 0.0625
    %v422 = vmul.f32 %v420, 0.0625
    %v423 = vmul.f32 %v421, %v421
    %v424 = vsub.f32 %v422, %v423
    %v425 = vmax.f32 %v424, 0.0
    %v426 = vsub.f32 %v399, %v421
    %v427 = vsub.f32 %v401, %v421
    %v428 = vadd.f32 %v425, 1e-05
    %v429 = vrsqrt.pop %v428
    %v430 = vmul.f32 %v429, %v428
    %v431 = vmul.f32 %v430, %v429
    %v432 = vmul.f32 0.5, %v431
    %v433 = vsub.f32 1.5, %v432
    %v434 = vmul.f32 %v429, %v433
    %vm435 = vweird.f32 %v428
    %vm436 = vweird.f32 %v429
    %vm437 = vmor %vm435, %vm436
    %v438 = vsel %vm437, %v429, %v434
    %v439 = vmul.f32 %v426, %v438
    %v440 = vmul.f32 %v427, %v438
    %v442 = vperm.slane %v403, 0
    %v444 = vmul.f32 %v439, %v442
    %v445 = vmul.f32 %v440, %v442
    %v447 = vperm.slane %v404, 0
    %v449 = vadd.f32 %v444, %v447
    %v450 = vadd.f32 %v445, %v447
    %v451 = vmax.f32 %v449, 0.0
    %v452 = vmax.f32 %v450, 0.0
    %v453 = vpack.c.bf16 %v452, %v451
    %v454 = vld [vmem:[#allocation5] sm:$0xf]
    %v455 = vld [vmem:[#allocation5 + $0x4] sm:$0xf]
    %v456 = vld [vmem:[#allocation5 + $0x8] sm:$0xf]
    %v457 = vld [vmem:[#allocation5 + $0xc] sm:$0xf]
    %v458 = vld [vmem:[#allocation5 + $0x10] sm:$0xf]
    %v459 = vld [vmem:[#allocation5 + $0x14] sm:$0xf]
    %v460 = vld [vmem:[#allocation5 + $0x18] sm:$0xf]
    %v461 = vld [vmem:[#allocation5 + $0x1c] sm:$0xf]
    %v462 = vld [vmem:[#allocation5 + $0x20] sm:$0xf]
    %v463 = vld [vmem:[#allocation5 + $0x24] sm:$0xf]
    %v464 = vld [vmem:[#allocation5 + $0x28] sm:$0xf]
    %v465 = vld [vmem:[#allocation5 + $0x2c] sm:$0xf]
    %v466 = vld [vmem:[#allocation5 + $0x30] sm:$0xf]
    %v467 = vld [vmem:[#allocation5 + $0x34] sm:$0xf]
    %v468 = vld [vmem:[#allocation5 + $0x38] sm:$0xf]
    %v469 = vld [vmem:[#allocation5 + $0x3c] sm:$0xf]
    %v470 = vld [vmem:[%s12] sm:$0x1]
    %v472 = vperm.slane %v470, 0
    %v490 = vunpack.c.l.b16 %v454
    %v491 = vunpack.c.l.b16 %v455
    %v492 = vunpack.c.l.b16 %v456
    %v493 = vunpack.c.l.b16 %v457
    %v494 = vunpack.c.l.b16 %v458
    %v495 = vunpack.c.l.b16 %v459
    %v496 = vunpack.c.l.b16 %v460
    %v497 = vunpack.c.l.b16 %v461
    %v498 = vunpack.c.l.b16 %v462
    %v499 = vunpack.c.l.b16 %v463
    %v500 = vunpack.c.l.b16 %v464
    %v501 = vunpack.c.l.b16 %v465
    %v502 = vunpack.c.l.b16 %v466
    %v503 = vunpack.c.l.b16 %v467
    %v504 = vunpack.c.l.b16 %v468
    %v505 = vunpack.c.l.b16 %v469
    %v506 = vpack.c.b16 %v491, %v490
    %v507 = vpack.c.b16 %v493, %v492
    %v508 = vpack.c.b16 %v495, %v494
    %v509 = vpack.c.b16 %v497, %v496
    %v510 = vpack.c.b16 %v499, %v498
    %v511 = vpack.c.b16 %v501, %v500
    %v512 = vpack.c.b16 %v503, %v502
    %v513 = vpack.c.b16 %v505, %v504
    %522 = vmatpush.bf16.msra.mxu0 %v513
    %523 = vmatpush.bf16.msra.mxu0 %v512
    %524 = vmatpush.bf16.msra.mxu0 %v511
    %525 = vmatpush.bf16.msra.mxu0 %v510
    %526 = vmatpush.bf16.msra.mxu0 %v509
    %527 = vmatpush.bf16.msra.mxu0 %v508
    %528 = vmatpush.bf16.msra.mxu0 %v507
    %529 = vmatpush.bf16.msra.mxu0 %v506
    %530 = vmatmul.bf16.gmra.mxu0 %v453
    %v531 = vpop.f32.mrf.mxu0
    %v532 = vadd.f32 %v472, %v531
    %v533 = vpop.f32.mrf.mxu0
    %v534 = vadd.f32 %v472, %v533
    %535 = vdwg.mxu0
    %v536 = vld [vmem:[%s13] sm:$0x1]
    %v537 = vld [vmem:[%s14] sm:$0x1]
    %v538 = vadd.f32 %v532, %v534
    %v539 = vrot.slane %v538, 4
    %v540 = vadd.f32 %v538, %v539
    %v541 = vrot.slane %v540, 2
    %v542 = vadd.f32 %v540, %v541
    %v543 = vrot.slane %v542, 1
    %v544 = vadd.f32 %v542, %v543
    %v545 = vmul.f32 %v532, %v532
    %v546 = vmul.f32 %v534, %v534
    %v547 = vadd.f32 %v545, %v546
    %v548 = vrot.slane %v547, 4
    %v549 = vadd.f32 %v547, %v548
    %v550 = vrot.slane %v549, 2
    %v551 = vadd.f32 %v549, %v550
    %v552 = vrot.slane %v551, 1
    %v553 = vadd.f32 %v551, %v552
    %v554 = vmul.f32 %v544, 0.0625
    %v555 = vmul.f32 %v553, 0.0625
    %v556 = vmul.f32 %v554, %v554
    %v557 = vsub.f32 %v555, %v556
    %v558 = vmax.f32 %v557, 0.0
    %v559 = vsub.f32 %v532, %v554
    %v560 = vsub.f32 %v534, %v554
    %v561 = vadd.f32 %v558, 1e-05
    %v562 = vrsqrt.pop %v561
    %v563 = vmul.f32 %v562, %v561
    %v564 = vmul.f32 %v563, %v562
    %v565 = vmul.f32 0.5, %v564
    %v566 = vsub.f32 1.5, %v565
    %v567 = vmul.f32 %v562, %v566
    %vm568 = vweird.f32 %v561
    %vm569 = vweird.f32 %v562
    %vm570 = vmor %vm568, %vm569
    %v571 = vsel %vm570, %v562, %v567
    %v572 = vmul.f32 %v559, %v571
    %v573 = vmul.f32 %v560, %v571
    %v575 = vperm.slane %v536, 0
    %v577 = vmul.f32 %v572, %v575
    %v578 = vmul.f32 %v573, %v575
    %v580 = vperm.slane %v537, 0
    %v582 = vadd.f32 %v577, %v580
    %v583 = vadd.f32 %v578, %v580
    %v584 = vmax.f32 %v582, 0.0
    %v585 = vmax.f32 %v583, 0.0
    %s586 = scalar_lea.vmem %s5, 4
    %v587 = vld [vmem:[%s586] sm:$0xf]
    %s588 = scalar_lea.vmem %s6, 1
    %v589 = vld [vmem:[%s588] sm:$0x1]
    %v590 = vperm.slane %v587, 0
    %v591 = vmul.f32 %v164, %v590
    %v592 = vmul.f32 %v169, %v590
    %v593 = vmul.f32 %v174, %v590
    %v594 = vmul.f32 %v179, %v590
    %v596 = vperm.slane %v589, 0
    %v598 = vadd.f32 %v596, %v591
    %v599 = vadd.f32 %v596, %v592
    %v600 = vadd.f32 %v596, %v593
    %v601 = vadd.f32 %v596, %v594
    %v602 = vperm.slane %v587, 1
    %v603 = vmul.f32 %v195, %v602
    %v604 = vmul.f32 %v199, %v602
    %v605 = vmul.f32 %v203, %v602
    %v606 = vmul.f32 %v207, %v602
    %v607 = vadd.f32 %v598, %v603
    %v608 = vadd.f32 %v599, %v604
    %v609 = vadd.f32 %v600, %v605
    %v610 = vadd.f32 %v601, %v606
    %v611 = vperm.slane %v587, 2
    %v612 = vmul.f32 %v220, %v611
    %v613 = vmul.f32 %v224, %v611
    %v614 = vmul.f32 %v228, %v611
    %v615 = vmul.f32 %v232, %v611
    %v616 = vadd.f32 %v607, %v612
    %v617 = vadd.f32 %v608, %v613
    %v618 = vadd.f32 %v609, %v614
    %v619 = vadd.f32 %v610, %v615
    %v620 = vperm.slane %v587, 3
    %v621 = vmul.f32 %v245, %v620
    %v622 = vmul.f32 %v249, %v620
    %v623 = vmul.f32 %v253, %v620
    %v624 = vmul.f32 %v257, %v620
    %v625 = vadd.f32 %v616, %v621
    %v626 = vadd.f32 %v617, %v622
    %v627 = vadd.f32 %v618, %v623
    %v628 = vadd.f32 %v619, %v624
    %v629 = vpack.c.bf16 %v585, %v584
    %630 = vmatpush.bf16.msra.mxu0 0
    %631 = vmatpush.bf16.msra.mxu0 0
    %632 = vmatpush.bf16.msra.mxu0 0
    %633 = vmatpush.bf16.msra.mxu0 0
    %634 = vmatpush.bf16.msra.mxu0 0
    %635 = vmatpush.bf16.msra.mxu0 0
    %636 = vmatpush.bf16.msra.mxu0 0
    %637 = vmatpush.bf16.msra.mxu0 %v629
    %638 = vmatmul.bf16.gmra.mxu0 %v270
    %v639 = vpop.f32.mrf.mxu0
    %v640 = vadd.f32 %v625, %v639
    %v641 = vpop.f32.mrf.mxu0
    %v642 = vadd.f32 %v626, %v641
    %643 = vmatmul.bf16.gmra.mxu0 %v273
    %v644 = vpop.f32.mrf.mxu0
    %v645 = vadd.f32 %v627, %v644
    %v646 = vpop.f32.mrf.mxu0
    %v647 = vadd.f32 %v628, %v646
    %648 = vdwg.mxu0
    %v649 = vmax.f32 %v640, 0.0
    %v650 = vmax.f32 %v642, 0.0
    %v651 = vmax.f32 %v645, 0.0
    %v652 = vmax.f32 %v647, 0.0
    %v653 = vpack.c.bf16 %v650, %v649
    %v654 = vpack.c.bf16 %v652, %v651
    %655 = vmatpush.bf16.msra.mxu0 0
    %656 = vmatpush.bf16.msra.mxu0 0
    %657 = vmatpush.bf16.msra.mxu0 0
    %658 = vmatpush.bf16.msra.mxu0 0
    %659 = vmatpush.bf16.msra.mxu0 0
    %660 = vmatpush.bf16.msra.mxu0 0
    %661 = vmatpush.bf16.msra.mxu0 %v654
    %662 = vmatpush.bf16.msra.mxu0 %v653
    %663 = vmatmul.bf16.gmra.mxu0 %v302
    %v664 = vpop.f32.mrf.mxu0
    %v665 = vadd.f32 0.0, %v664
    %v666 = vpop.f32.mrf.mxu0
    %v667 = vadd.f32 0.0, %v666
    %668 = vdwg.mxu0
    %v669 = vadd.f32 %v584, %v665
    %v670 = vadd.f32 %v585, %v667
    %v671 = vpack.c.bf16 %v670, %v669
    %s672 = scalar_lea.vmem [#allocation2], 64
    %v673 = vld [vmem:[%s672] sm:$0xf]
    %v674 = vld [vmem:[%s672 + $0x4] sm:$0xf]
    %v675 = vld [vmem:[%s672 + $0x8] sm:$0xf]
    %v676 = vld [vmem:[%s672 + $0xc] sm:$0xf]
    %v677 = vld [vmem:[%s672 + $0x10] sm:$0xf]
    %v678 = vld [vmem:[%s672 + $0x14] sm:$0xf]
    %v679 = vld [vmem:[%s672 + $0x18] sm:$0xf]
    %v680 = vld [vmem:[%s672 + $0x1c] sm:$0xf]
    %v681 = vld [vmem:[%s672 + $0x20] sm:$0xf]
    %v682 = vld [vmem:[%s672 + $0x24] sm:$0xf]
    %v683 = vld [vmem:[%s672 + $0x28] sm:$0xf]
    %v684 = vld [vmem:[%s672 + $0x2c] sm:$0xf]
    %v685 = vld [vmem:[%s672 + $0x30] sm:$0xf]
    %v686 = vld [vmem:[%s672 + $0x34] sm:$0xf]
    %v687 = vld [vmem:[%s672 + $0x38] sm:$0xf]
    %v688 = vld [vmem:[%s672 + $0x3c] sm:$0xf]
    %s689 = scalar_lea.vmem %s8, 1
    %v690 = vld [vmem:[%s689] sm:$0x1]
    %v692 = vperm.slane %v690, 0
    %v710 = vunpack.c.l.b16 %v673
    %v711 = vunpack.c.l.b16 %v674
    %v712 = vunpack.c.l.b16 %v675
    %v713 = vunpack.c.l.b16 %v676
    %v714 = vunpack.c.l.b16 %v677
    %v715 = vunpack.c.l.b16 %v678
    %v716 = vunpack.c.l.b16 %v679
    %v717 = vunpack.c.l.b16 %v680
    %v718 = vunpack.c.l.b16 %v681
    %v719 = vunpack.c.l.b16 %v682
    %v720 = vunpack.c.l.b16 %v683
    %v721 = vunpack.c.l.b16 %v684
    %v722 = vunpack.c.l.b16 %v685
    %v723 = vunpack.c.l.b16 %v686
    %v724 = vunpack.c.l.b16 %v687
    %v725 = vunpack.c.l.b16 %v688
    %v726 = vpack.c.b16 %v711, %v710
    %v727 = vpack.c.b16 %v713, %v712
    %v728 = vpack.c.b16 %v715, %v714
    %v729 = vpack.c.b16 %v717, %v716
    %v730 = vpack.c.b16 %v719, %v718
    %v731 = vpack.c.b16 %v721, %v720
    %v732 = vpack.c.b16 %v723, %v722
    %v733 = vpack.c.b16 %v725, %v724
    %742 = vmatpush.bf16.msra.mxu0 %v733
    %743 = vmatpush.bf16.msra.mxu0 %v732
    %744 = vmatpush.bf16.msra.mxu0 %v731
    %745 = vmatpush.bf16.msra.mxu0 %v730
    %746 = vmatpush.bf16.msra.mxu0 %v729
    %747 = vmatpush.bf16.msra.mxu0 %v728
    %748 = vmatpush.bf16.msra.mxu0 %v727
    %749 = vmatpush.bf16.msra.mxu0 %v726
    %750 = vmatmul.bf16.gmra.mxu0 %v671
    %v751 = vpop.f32.mrf.mxu0
    %v752 = vadd.f32 %v692, %v751
    %v753 = vpop.f32.mrf.mxu0
    %v754 = vadd.f32 %v692, %v753
    %755 = vdwg.mxu0
    %s756 = scalar_lea.vmem %s9, 1
    %v757 = vld [vmem:[%s756] sm:$0x1]
    %s758 = scalar_lea.vmem %s10, 1
    %v759 = vld [vmem:[%s758] sm:$0x1]
    %v760 = vadd.f32 %v752, %v754
    %v761 = vrot.slane %v760, 4
    %v762 = vadd.f32 %v760, %v761
    %v763 = vrot.slane %v762, 2
    %v764 = vadd.f32 %v762, %v763
    %v765 = vrot.slane %v764, 1
    %v766 = vadd.f32 %v764, %v765
    %v767 = vmul.f32 %v752, %v752
    %v768 = vmul.f32 %v754, %v754
    %v769 = vadd.f32 %v767, %v768
    %v770 = vrot.slane %v769, 4
    %v771 = vadd.f32 %v769, %v770
    %v772 = vrot.slane %v771, 2
    %v773 = vadd.f32 %v771, %v772
    %v774 = vrot.slane %v773, 1
    %v775 = vadd.f32 %v773, %v774
    %v776 = vmul.f32 %v766, 0.0625
    %v777 = vmul.f32 %v775, 0.0625
    %v778 = vmul.f32 %v776, %v776
    %v779 = vsub.f32 %v777, %v778
    %v780 = vmax.f32 %v779, 0.0
    %v781 = vsub.f32 %v752, %v776
    %v782 = vsub.f32 %v754, %v776
    %v783 = vadd.f32 %v780, 1e-05
    %v784 = vrsqrt.pop %v783
    %v785 = vmul.f32 %v784, %v783
    %v786 = vmul.f32 %v785, %v784
    %v787 = vmul.f32 0.5, %v786
    %v788 = vsub.f32 1.5, %v787
    %v789 = vmul.f32 %v784, %v788
    %vm790 = vweird.f32 %v783
    %vm791 = vweird.f32 %v784
    %vm792 = vmor %vm790, %vm791
    %v793 = vsel %vm792, %v784, %v789
    %v794 = vmul.f32 %v781, %v793
    %v795 = vmul.f32 %v782, %v793
    %v797 = vperm.slane %v757, 0
    %v799 = vmul.f32 %v794, %v797
    %v800 = vmul.f32 %v795, %v797
    %v802 = vperm.slane %v759, 0
    %v804 = vadd.f32 %v799, %v802
    %v805 = vadd.f32 %v800, %v802
    %v806 = vmax.f32 %v804, 0.0
    %v807 = vmax.f32 %v805, 0.0
    %v808 = vpack.c.bf16 %v807, %v806
    %s809 = scalar_lea.vmem [#allocation5], 64
    %v810 = vld [vmem:[%s809] sm:$0xf]
    %v811 = vld [vmem:[%s809 + $0x4] sm:$0xf]
    %v812 = vld [vmem:[%s809 + $0x8] sm:$0xf]
    %v813 = vld [vmem:[%s809 + $0xc] sm:$0xf]
    %v814 = vld [vmem:[%s809 + $0x10] sm:$0xf]
    %v815 = vld [vmem:[%s809 + $0x14] sm:$0xf]
    %v816 = vld [vmem:[%s809 + $0x18] sm:$0xf]
    %v817 = vld [vmem:[%s809 + $0x1c] sm:$0xf]
    %v818 = vld [vmem:[%s809 + $0x20] sm:$0xf]
    %v819 = vld [vmem:[%s809 + $0x24] sm:$0xf]
    %v820 = vld [vmem:[%s809 + $0x28] sm:$0xf]
    %v821 = vld [vmem:[%s809 + $0x2c] sm:$0xf]
    %v822 = vld [vmem:[%s809 + $0x30] sm:$0xf]
    %v823 = vld [vmem:[%s809 + $0x34] sm:$0xf]
    %v824 = vld [vmem:[%s809 + $0x38] sm:$0xf]
    %v825 = vld [vmem:[%s809 + $0x3c] sm:$0xf]
    %s826 = scalar_lea.vmem %s12, 1
    %v827 = vld [vmem:[%s826] sm:$0x1]
    %v829 = vperm.slane %v827, 0
    %v847 = vunpack.c.l.b16 %v810
    %v848 = vunpack.c.l.b16 %v811
    %v849 = vunpack.c.l.b16 %v812
    %v850 = vunpack.c.l.b16 %v813
    %v851 = vunpack.c.l.b16 %v814
    %v852 = vunpack.c.l.b16 %v815
    %v853 = vunpack.c.l.b16 %v816
    %v854 = vunpack.c.l.b16 %v817
    %v855 = vunpack.c.l.b16 %v818
    %v856 = vunpack.c.l.b16 %v819
    %v857 = vunpack.c.l.b16 %v820
    %v858 = vunpack.c.l.b16 %v821
    %v859 = vunpack.c.l.b16 %v822
    %v860 = vunpack.c.l.b16 %v823
    %v861 = vunpack.c.l.b16 %v824
    %v862 = vunpack.c.l.b16 %v825
    %v863 = vpack.c.b16 %v848, %v847
    %v864 = vpack.c.b16 %v850, %v849
    %v865 = vpack.c.b16 %v852, %v851
    %v866 = vpack.c.b16 %v854, %v853
    %v867 = vpack.c.b16 %v856, %v855
    %v868 = vpack.c.b16 %v858, %v857
    %v869 = vpack.c.b16 %v860, %v859
    %v870 = vpack.c.b16 %v862, %v861
    %879 = vmatpush.bf16.msra.mxu0 %v870
    %880 = vmatpush.bf16.msra.mxu0 %v869
    %881 = vmatpush.bf16.msra.mxu0 %v868
    %882 = vmatpush.bf16.msra.mxu0 %v867
    %883 = vmatpush.bf16.msra.mxu0 %v866
    %884 = vmatpush.bf16.msra.mxu0 %v865
    %885 = vmatpush.bf16.msra.mxu0 %v864
    %886 = vmatpush.bf16.msra.mxu0 %v863
    %887 = vmatmul.bf16.gmra.mxu0 %v808
    %v888 = vpop.f32.mrf.mxu0
    %v889 = vadd.f32 %v829, %v888
    %v890 = vpop.f32.mrf.mxu0
    %v891 = vadd.f32 %v829, %v890
    %892 = vdwg.mxu0
    %s893 = scalar_lea.vmem %s13, 1
    %v894 = vld [vmem:[%s893] sm:$0x1]
    %s895 = scalar_lea.vmem %s14, 1
    %v896 = vld [vmem:[%s895] sm:$0x1]
    %v897 = vadd.f32 %v889, %v891
    %v898 = vrot.slane %v897, 4
    %v899 = vadd.f32 %v897, %v898
    %v900 = vrot.slane %v899, 2
    %v901 = vadd.f32 %v899, %v900
    %v902 = vrot.slane %v901, 1
    %v903 = vadd.f32 %v901, %v902
    %v904 = vmul.f32 %v889, %v889
    %v905 = vmul.f32 %v891, %v891
    %v906 = vadd.f32 %v904, %v905
    %v907 = vrot.slane %v906, 4
    %v908 = vadd.f32 %v906, %v907
    %v909 = vrot.slane %v908, 2
    %v910 = vadd.f32 %v908, %v909
    %v911 = vrot.slane %v910, 1
    %v912 = vadd.f32 %v910, %v911
    %v913 = vmul.f32 %v903, 0.0625
    %v914 = vmul.f32 %v912, 0.0625
    %v915 = vmul.f32 %v913, %v913
    %v916 = vsub.f32 %v914, %v915
    %v917 = vmax.f32 %v916, 0.0
    %v918 = vsub.f32 %v889, %v913
    %v919 = vsub.f32 %v891, %v913
    %v920 = vadd.f32 %v917, 1e-05
    %v921 = vrsqrt.pop %v920
    %v922 = vmul.f32 %v921, %v920
    %v923 = vmul.f32 %v922, %v921
    %v924 = vmul.f32 0.5, %v923
    %v925 = vsub.f32 1.5, %v924
    %v926 = vmul.f32 %v921, %v925
    %vm927 = vweird.f32 %v920
    %vm928 = vweird.f32 %v921
    %vm929 = vmor %vm927, %vm928
    %v930 = vsel %vm929, %v921, %v926
    %v931 = vmul.f32 %v918, %v930
    %v932 = vmul.f32 %v919, %v930
    %v934 = vperm.slane %v894, 0
    %v936 = vmul.f32 %v931, %v934
    %v937 = vmul.f32 %v932, %v934
    %v939 = vperm.slane %v896, 0
    %v941 = vadd.f32 %v936, %v939
    %v942 = vadd.f32 %v937, %v939
    %943 = vst [vmem:[#allocation7] sm:$0xff] %v941
    %944 = vst [vmem:[#allocation7 + $0x8] sm:$0xff] %v942
    // Predicated region
    $region70: #{tpu_custom_call.1} parent=1 // pred_check
      _
    $region71: #{tpu_custom_call.1} parent=1 // pred_check_branch
      %946 = sbr.rel (0) target = $region73
    $region72: #{tpu_custom_call.1} parent=1 // pred_region
      %948 = vsyncadd [#allocation4], 0
      %s949 = sshll.u32 [#allocation7], 4
      %s950 = int_to_ptr.vmem [resolvable:$true] %s949
      %s951 = sshll.u32 %s15, 4
      %s952 = int_to_ptr.hbm [resolvable:$true] %s951
      %957 = dma.vmem_to_hbm [thread:$0]  %s950, 256, %s952, [#allocation4], 128, 128, 8
    $region73: #{tpu_custom_call.1} parent=1 // pred_fallthru
      _
    // Predicated region
    $region74: #{tpu_custom_call.1} parent=1 // pred_check
      _
    $region75: #{tpu_custom_call.1} parent=1 // pred_check_branch
      %959 = sbr.rel (0) target = $region77
    $region76: #{tpu_custom_call.1} parent=1 // pred_region
      %961 = dma.done [#allocation4], 256
    $region77: #{tpu_custom_call.1} parent=1 // pred_fallthru
      _
    %962 = vsyncpa [#allocation3], 1
    %963 = vsyncpa [#allocation6], 1
    %964 = vsyncpa [#allocation4], 1

</llo_original>
